<compile_context>
chip_gen: v7x
topology: tpu7x:2x2x1
jax: 0.10.0
libtpu: 0.0.40
codegen_flags: <defaults>
</compile_context>

<pallas_src>
import functools

import jax
import jax.numpy as jnp
from jax.experimental import pallas as pl
from jax.experimental.pallas import tpu as pltpu

KSIZE = 7
PAD = 3


def _rup(v, m):
    return ((v + m - 1) // m) * m


def cbam_kernel(mask_ref, wpack_ref, x_ref, o_ref, *, H, W, C, Cr):
    f32 = jnp.float32
    C2 = 2 * C
    r1 = _rup(C2, 8)
    r2 = r1 + _rup(Cr, 8)
    HW = H * W

    x = x_ref[...]                                   # (Bt, C, HW), lane-dense
    Bt = x.shape[0]

    # ---------------- channel attention (exact f32, vectorized over Bt) ----
    avg = jnp.mean(x, axis=2)                        # (Bt, C)
    mx = jnp.max(x, axis=2)                          # (Bt, C)
    w1a = wpack_ref[0:C, 0:Cr]                       # fc1 taps for avg-pool
    w1b = wpack_ref[C:C2, 0:Cr]                      # fc1 taps for max-pool
    h1 = (jnp.sum(avg[:, :, None] * w1a[None, :, :], axis=1) +
          jnp.sum(mx[:, :, None] * w1b[None, :, :], axis=1))      # (Bt, Cr)
    h1 = jnp.maximum(h1, 0.0)                        # ReLU
    w2t = wpack_ref[r1:r1 + Cr, 0:C]                 # (Cr, C)
    h2 = jnp.sum(h1[:, :, None] * w2t[None, :, :], axis=1)        # (Bt, C)
    att = jax.nn.sigmoid(h2)                         # (Bt, C) channel attention

    # ---------------- spatial attention ------------------------------------
    # conv(cat([x*att, x]), w7x7): one per-sample K=2C MXU matmul (bf16 operands,
    # f32 accumulation), taps laid out dw-major in padded groups of 8 rows.
    xcat = jnp.concatenate([x * att[:, :, None], x], axis=1)      # (Bt, 2C, HW)
    xcat = xcat.astype(jnp.bfloat16)
    wst = wpack_ref[r2:r2 + 8 * KSIZE, 0:C2].astype(jnp.bfloat16)  # (56, 2C)
    taps = jnp.stack(
        [jnp.dot(wst, xcat[b], preferred_element_type=f32) for b in range(Bt)],
        axis=0)                                      # (Bt, 56, HW)

    # column stage: one slab roll + one mask multiply per column shift,
    # summed over the 7 shifts (all slices are 8-row sublane-aligned).
    inner = None
    for dw in range(KSIZE):
        sw = dw - PAD
        slab = taps[:, dw * 8:dw * 8 + 8, :]         # (Bt, 8, HW)
        if sw != 0:
            slab = pltpu.roll(slab, (-sw) % HW, axis=2)    # XLU lane rotate
        slab = slab * mask_ref[dw:dw + 1, :]         # column zero-pad mask
        inner = slab if inner is None else inner + slab

    # row stage: 6 single-row rolls (by multiples of W) + row masks + sum.
    acc = None
    for dh in range(KSIZE):
        sh = dh - PAD
        row = inner[:, dh:dh + 1, :]                 # (Bt, 1, HW)
        if sh != 0:
            row = pltpu.roll(row, (-sh * W) % HW, axis=2)
        row = row * mask_ref[8 + dh:9 + dh, :]       # row zero-pad mask
        acc = row if acc is None else acc + row

    spat = jax.nn.sigmoid(acc)                       # (Bt, 1, HW)

    # final: original x * spatial attention map (matches `out = x * out`)
    o_ref[...] = (x * spat).astype(o_ref.dtype)


def _pick_bt(B, C, HW, itemsize, target_bytes=1 << 20):
    """Largest Bt dividing B with ~1 MiB x-blocks, keeping >=2 grid steps."""
    per = max(1, C * HW * itemsize)
    bt = max(1, min(B, target_bytes // per))
    while bt > 1 and (B % bt != 0 or B // bt < 2):
        bt -= 1
    return max(1, bt)


@jax.jit
def cbam_forward(x, w_fc1, w_fc2, w_sp):
    B, C, H, W = x.shape
    Cr = w_fc1.shape[0]
    C2 = 2 * C
    HW = H * W
    Bt = _pick_bt(B, C, HW, x.dtype.itemsize)

    x2 = x.reshape(B, C, HW)                         # lane dim = H*W

    # ----- one packed, lane-dense weight slab (sections sublane-aligned) ----
    r1 = _rup(C2, 8)
    r2 = r1 + _rup(Cr, 8)
    RP = r2 + 8 * KSIZE
    LP = _rup(max(C2, C, Cr), 128)
    # spatial taps dw-major, padded to 8 rows per column-shift group
    w3 = jnp.transpose(w_sp[0], (2, 1, 0))           # (7_dw, 7_dh, 2C)
    w3 = jnp.pad(w3, ((0, 0), (0, 1), (0, 0)))       # (7, 8, 2C)
    wstack = w3.reshape(8 * KSIZE, C2)
    wpack = jnp.zeros((RP, LP), jnp.float32)
    wpack = wpack.at[0:C, 0:Cr].set(jnp.transpose(w_fc1[:, :C]))
    wpack = wpack.at[C:C2, 0:Cr].set(jnp.transpose(w_fc1[:, C:]))
    wpack = wpack.at[r1:r1 + Cr, 0:C].set(jnp.transpose(w_fc2))
    wpack = wpack.at[r2:r2 + 8 * KSIZE, 0:C2].set(wstack)

    # ----- zero-padding masks (depend only on H, W), one lane-dense slab ----
    pos = jnp.arange(HW, dtype=jnp.int32)
    r = pos // W
    c = pos % W
    cm = jnp.stack([((c + (dw - PAD) >= 0) & (c + (dw - PAD) < W))
                    for dw in range(KSIZE)]).astype(jnp.float32)   # (7, HW)
    rm = jnp.stack([((r + (dh - PAD) >= 0) & (r + (dh - PAD) < H))
                    for dh in range(KSIZE)]).astype(jnp.float32)   # (7, HW)
    masks = jnp.zeros((16, HW), jnp.float32)
    masks = masks.at[0:KSIZE].set(cm).at[8:8 + KSIZE].set(rm)

    cost = pl.CostEstimate(
        flops=int(B * (2 * 8 * KSIZE * C2 * HW + 16 * C * HW)),
        transcendentals=int(B * (HW + C)),
        bytes_accessed=int(x.dtype.itemsize * 2 * B * C * HW
                           + 4 * (wpack.size + masks.size)),
    )

    out2 = pl.pallas_call(
        functools.partial(cbam_kernel, H=H, W=W, C=C, Cr=Cr),
        out_shape=jax.ShapeDtypeStruct((B, C, HW), x.dtype),
        grid_spec=pltpu.PrefetchScalarGridSpec(
            num_scalar_prefetch=0,
            grid=(B // Bt,),
            in_specs=[
                pl.BlockSpec((16, HW), lambda i: (0, 0)),          # masks
                pl.BlockSpec((RP, LP), lambda i: (0, 0)),          # weights
                pl.BlockSpec((Bt, C, HW), lambda i: (i, 0, 0)),    # x
            ],
            out_specs=pl.BlockSpec((Bt, C, HW), lambda i: (i, 0, 0)),
        ),
        compiler_params=pltpu.CompilerParams(
            dimension_semantics=("parallel",)),
        cost_estimate=cost,
    )(masks, wpack, x2)

    return out2.reshape(B, C, H, W)


def cbam_reference(x, w_fc1, w_fc2, w_sp):
    """Pure-JAX reference mirroring the (shape-fixed) PyTorch forward."""
    hp = jax.lax.Precision.HIGHEST
    avg = jnp.mean(x, axis=(2, 3), keepdims=True)
    mx = jnp.max(x, axis=(2, 3), keepdims=True)
    pooled = jnp.concatenate([avg, mx], axis=1)                  # (B, 2C, 1, 1)
    h = jnp.einsum("oc,bcij->boij", w_fc1, pooled, precision=hp)
    h = jnp.maximum(h, 0.0)
    h = jnp.einsum("oc,bcij->boij", w_fc2, h, precision=hp)
    att = jax.nn.sigmoid(h)                                      # (B, C, 1, 1)
    y = x * att
    cat = jnp.concatenate([y, x], axis=1)                        # (B, 2C, H, W)
    conv = jax.lax.conv_general_dilated(
        cat, w_sp, (1, 1), [(PAD, PAD), (PAD, PAD)],
        dimension_numbers=("NCHW", "OIHW", "NCHW"), precision=hp)
    spat = jax.nn.sigmoid(conv)                                  # (B, 1, H, W)
    return x * spat


if __name__ == "__main__":
    B, C, H, W = 2, 32, 16, 16
    reduction = 16
    Cr = C // reduction

    key = jax.random.PRNGKey(0)
    k1, k2, k3, kx = jax.random.split(key, 4)
    w_fc1 = jax.random.normal(k1, (Cr, 2 * C), jnp.float32) * 0.1   # fc1 (2C -> C//r)
    w_fc2 = jax.random.normal(k2, (C, Cr), jnp.float32) * 0.1       # fc2 (C//r -> C)
    w_sp = jax.random.normal(k3, (1, 2 * C, KSIZE, KSIZE), jnp.float32) * 0.05
    x = jax.random.normal(kx, (B, C, H, W), jnp.float32)

    out = jax.block_until_ready(cbam_forward(x, w_fc1, w_fc2, w_sp))

    ref = cbam_reference(x, w_fc1, w_fc2, w_sp)
    assert out.shape == (B, C, H, W)
    # Tolerance sized for bf16 matmul operands (per perf review) with f32
    # accumulation; the sigmoid bounds the relative error of the attention maps.
    err = float(jnp.max(jnp.abs(out - ref)))
    assert jnp.allclose(out, ref, rtol=2e-2, atol=2e-3), err

    print("KERNEL_OK")
</pallas_src>

<mosaic_0001>
module attributes {stable_mosaic.version = 11 : i64} {
  func.func @cbam_kernel(%arg0: i32, %arg1: memref<16x256xf32, #tpu.memory_space<vmem>>, %arg2: memref<128x128xf32, #tpu.memory_space<vmem>>, %arg3: memref<1x32x256xf32, #tpu.memory_space<vmem>>, %arg4: memref<1x32x256xf32, #tpu.memory_space<vmem>>) attributes {dimension_semantics = [#tpu.dimension_semantics<parallel>], iteration_bounds = array<i64: 2>, scalar_prefetch = 0 : i64, scratch_operands = 0 : i64, tpu.core_type = #tpu.core_type<tc>, window_params = [{pipeline_mode = #tpu.pipeline_mode<synchronous>, transform_indices = @transform_0, window_bounds = array<i64: 16, 256>}, {pipeline_mode = #tpu.pipeline_mode<synchronous>, transform_indices = @transform_1, window_bounds = array<i64: 128, 128>}, {transform_indices = @transform_2, window_bounds = array<i64: 1, 32, 256>}, {transform_indices = @transform_3, window_bounds = array<i64: 1, 32, 256>}]} {
    %c0 = arith.constant 0 : index
    %c0_0 = arith.constant 0 : index
    %c0_1 = arith.constant 0 : index
    %0 = vector.load %arg3[%c0, %c0_0, %c0_1] : memref<1x32x256xf32, #tpu.memory_space<vmem>>, vector<1x32x256xf32>
    %cst = arith.constant dense<0.000000e+00> : vector<1x32xf32>
    %1 = vector.multi_reduction <add>, %0, %cst [2] : vector<1x32x256xf32> to vector<1x32xf32>
    %cst_2 = arith.constant 2.560000e+02 : f32
    %2 = vector.broadcast %cst_2 : f32 to vector<1x32xf32>
    %3 = arith.divf %1, %2 : vector<1x32xf32>
    %cst_3 = arith.constant dense<0xFF800000> : vector<1x32xf32>
    %4 = vector.multi_reduction <maximumf>, %0, %cst_3 [2] : vector<1x32x256xf32> to vector<1x32xf32>
    %c0_4 = arith.constant 0 : index
    %c0_5 = arith.constant 0 : index
    %5 = vector.load %arg2[%c0_4, %c0_5] : memref<128x128xf32, #tpu.memory_space<vmem>>, vector<32x2xf32>
    %c32 = arith.constant 32 : index
    %c0_6 = arith.constant 0 : index
    %6 = vector.load %arg2[%c32, %c0_6] : memref<128x128xf32, #tpu.memory_space<vmem>>, vector<32x2xf32>
    %7 = vector.shape_cast %3 : vector<1x32xf32> to vector<1x32x1xf32>
    %8 = vector.shape_cast %5 : vector<32x2xf32> to vector<1x32x2xf32>
    %9 = vector.broadcast %7 : vector<1x32x1xf32> to vector<1x32x2xf32>
    %10 = arith.mulf %9, %8 : vector<1x32x2xf32>
    %cst_7 = arith.constant dense<0.000000e+00> : vector<1x2xf32>
    %11 = vector.multi_reduction <add>, %10, %cst_7 [1] : vector<1x32x2xf32> to vector<1x2xf32>
    %12 = vector.shape_cast %4 : vector<1x32xf32> to vector<1x32x1xf32>
    %13 = vector.shape_cast %6 : vector<32x2xf32> to vector<1x32x2xf32>
    %14 = vector.broadcast %12 : vector<1x32x1xf32> to vector<1x32x2xf32>
    %15 = arith.mulf %14, %13 : vector<1x32x2xf32>
    %cst_8 = arith.constant dense<0.000000e+00> : vector<1x2xf32>
    %16 = vector.multi_reduction <add>, %15, %cst_8 [1] : vector<1x32x2xf32> to vector<1x2xf32>
    %17 = arith.addf %11, %16 : vector<1x2xf32>
    %cst_9 = arith.constant 0.000000e+00 : f32
    %18 = vector.broadcast %cst_9 : f32 to vector<1x2xf32>
    %19 = arith.maximumf %17, %18 : vector<1x2xf32>
    %c64 = arith.constant 64 : index
    %c0_10 = arith.constant 0 : index
    %20 = vector.load %arg2[%c64, %c0_10] : memref<128x128xf32, #tpu.memory_space<vmem>>, vector<2x32xf32>
    %21 = vector.shape_cast %19 : vector<1x2xf32> to vector<1x2x1xf32>
    %22 = vector.shape_cast %20 : vector<2x32xf32> to vector<1x2x32xf32>
    %23 = vector.broadcast %21 : vector<1x2x1xf32> to vector<1x2x32xf32>
    %24 = arith.mulf %23, %22 : vector<1x2x32xf32>
    %cst_11 = arith.constant dense<0.000000e+00> : vector<1x32xf32>
    %25 = vector.multi_reduction <add>, %24, %cst_11 [1] : vector<1x2x32xf32> to vector<1x32xf32>
    %26 = arith.negf %25 : vector<1x32xf32>
    %27 = math.exp %26 : vector<1x32xf32>
    %cst_12 = arith.constant 1.000000e+00 : f32
    %28 = vector.broadcast %cst_12 : f32 to vector<1x32xf32>
    %29 = arith.addf %28, %27 : vector<1x32xf32>
    %30 = arith.divf %28, %29 : vector<1x32xf32>
    %31 = vector.shape_cast %30 : vector<1x32xf32> to vector<1x32x1xf32>
    %32 = vector.broadcast %31 : vector<1x32x1xf32> to vector<1x32x256xf32>
    %33 = arith.mulf %0, %32 : vector<1x32x256xf32>
    %34 = tpu.concatenate %33, %0 in 1 : vector<1x32x256xf32>, vector<1x32x256xf32> -> vector<1x64x256xf32>
    %35 = arith.truncf %34 : vector<1x64x256xf32> to vector<1x64x256xbf16>
    %c72 = arith.constant 72 : index
    %c0_13 = arith.constant 0 : index
    %36 = vector.load %arg2[%c72, %c0_13] : memref<128x128xf32, #tpu.memory_space<vmem>>, vector<56x64xf32>
    %37 = arith.truncf %36 : vector<56x64xf32> to vector<56x64xbf16>
    %38 = vector.shape_cast %35 : vector<1x64x256xbf16> to vector<64x256xbf16>
    %cst_14 = arith.constant dense<0.000000e+00> : vector<56x256xf32>
    %39 = tpu.matmul %37, %38, %cst_14 {dimension_numbers = #tpu.dot_dimension_numbers<[1], [0], [0], [1], [0, 0, 1, 1], [], []>} : vector<56x64xbf16>, vector<64x256xbf16>, vector<56x256xf32> -> vector<56x256xf32>
    %40 = vector.shape_cast %39 : vector<56x256xf32> to vector<1x56x256xf32>
    %41 = vector.extract_strided_slice %40 {offsets = [0, 0, 0], sizes = [1, 8, 256], strides = [1, 1, 1]} : vector<1x56x256xf32> to vector<1x8x256xf32>
    %c3_i32 = arith.constant 3 : i32
    %42 = tpu.dynamic_rotate %41 by %c3_i32 dim 2 : vector<1x8x256xf32>, i32 -> vector<1x8x256xf32>
    %c0_15 = arith.constant 0 : index
    %c0_16 = arith.constant 0 : index
    %43 = vector.load %arg1[%c0_15, %c0_16] : memref<16x256xf32, #tpu.memory_space<vmem>>, vector<1x256xf32>
    %44 = vector.shape_cast %43 : vector<1x256xf32> to vector<1x1x256xf32>
    %45 = vector.broadcast %44 : vector<1x1x256xf32> to vector<1x8x256xf32>
    %46 = arith.mulf %42, %45 : vector<1x8x256xf32>
    %47 = vector.extract_strided_slice %40 {offsets = [0, 8, 0], sizes = [1, 8, 256], strides = [1, 1, 1]} : vector<1x56x256xf32> to vector<1x8x256xf32>
    %c2_i32 = arith.constant 2 : i32
    %48 = tpu.dynamic_rotate %47 by %c2_i32 dim 2 : vector<1x8x256xf32>, i32 -> vector<1x8x256xf32>
    %c1 = arith.constant 1 : index
    %c0_17 = arith.constant 0 : index
    %49 = vector.load %arg1[%c1, %c0_17] : memref<16x256xf32, #tpu.memory_space<vmem>>, vector<1x256xf32>
    %50 = vector.shape_cast %49 : vector<1x256xf32> to vector<1x1x256xf32>
    %51 = vector.broadcast %50 : vector<1x1x256xf32> to vector<1x8x256xf32>
    %52 = arith.mulf %48, %51 : vector<1x8x256xf32>
    %53 = arith.addf %46, %52 : vector<1x8x256xf32>
    %54 = vector.extract_strided_slice %40 {offsets = [0, 16, 0], sizes = [1, 8, 256], strides = [1, 1, 1]} : vector<1x56x256xf32> to vector<1x8x256xf32>
    %c1_i32 = arith.constant 1 : i32
    %55 = tpu.dynamic_rotate %54 by %c1_i32 dim 2 : vector<1x8x256xf32>, i32 -> vector<1x8x256xf32>
    %c2 = arith.constant 2 : index
    %c0_18 = arith.constant 0 : index
    %56 = vector.load %arg1[%c2, %c0_18] : memref<16x256xf32, #tpu.memory_space<vmem>>, vector<1x256xf32>
    %57 = vector.shape_cast %56 : vector<1x256xf32> to vector<1x1x256xf32>
    %58 = vector.broadcast %57 : vector<1x1x256xf32> to vector<1x8x256xf32>
    %59 = arith.mulf %55, %58 : vector<1x8x256xf32>
    %60 = arith.addf %53, %59 : vector<1x8x256xf32>
    %61 = vector.extract_strided_slice %40 {offsets = [0, 24, 0], sizes = [1, 8, 256], strides = [1, 1, 1]} : vector<1x56x256xf32> to vector<1x8x256xf32>
    %c3 = arith.constant 3 : index
    %c0_19 = arith.constant 0 : index
    %62 = vector.load %arg1[%c3, %c0_19] : memref<16x256xf32, #tpu.memory_space<vmem>>, vector<1x256xf32>
    %63 = vector.shape_cast %62 : vector<1x256xf32> to vector<1x1x256xf32>
    %64 = vector.broadcast %63 : vector<1x1x256xf32> to vector<1x8x256xf32>
    %65 = arith.mulf %61, %64 : vector<1x8x256xf32>
    %66 = arith.addf %60, %65 : vector<1x8x256xf32>
    %67 = vector.extract_strided_slice %40 {offsets = [0, 32, 0], sizes = [1, 8, 256], strides = [1, 1, 1]} : vector<1x56x256xf32> to vector<1x8x256xf32>
    %c255_i32 = arith.constant 255 : i32
    %68 = tpu.dynamic_rotate %67 by %c255_i32 dim 2 : vector<1x8x256xf32>, i32 -> vector<1x8x256xf32>
    %c4 = arith.constant 4 : index
    %c0_20 = arith.constant 0 : index
    %69 = vector.load %arg1[%c4, %c0_20] : memref<16x256xf32, #tpu.memory_space<vmem>>, vector<1x256xf32>
    %70 = vector.shape_cast %69 : vector<1x256xf32> to vector<1x1x256xf32>
    %71 = vector.broadcast %70 : vector<1x1x256xf32> to vector<1x8x256xf32>
    %72 = arith.mulf %68, %71 : vector<1x8x256xf32>
    %73 = arith.addf %66, %72 : vector<1x8x256xf32>
    %74 = vector.extract_strided_slice %40 {offsets = [0, 40, 0], sizes = [1, 8, 256], strides = [1, 1, 1]} : vector<1x56x256xf32> to vector<1x8x256xf32>
    %c254_i32 = arith.constant 254 : i32
    %75 = tpu.dynamic_rotate %74 by %c254_i32 dim 2 : vector<1x8x256xf32>, i32 -> vector<1x8x256xf32>
    %c5 = arith.constant 5 : index
    %c0_21 = arith.constant 0 : index
    %76 = vector.load %arg1[%c5, %c0_21] : memref<16x256xf32, #tpu.memory_space<vmem>>, vector<1x256xf32>
    %77 = vector.shape_cast %76 : vector<1x256xf32> to vector<1x1x256xf32>
    %78 = vector.broadcast %77 : vector<1x1x256xf32> to vector<1x8x256xf32>
    %79 = arith.mulf %75, %78 : vector<1x8x256xf32>
    %80 = arith.addf %73, %79 : vector<1x8x256xf32>
    %81 = vector.extract_strided_slice %40 {offsets = [0, 48, 0], sizes = [1, 8, 256], strides = [1, 1, 1]} : vector<1x56x256xf32> to vector<1x8x256xf32>
    %c253_i32 = arith.constant 253 : i32
    %82 = tpu.dynamic_rotate %81 by %c253_i32 dim 2 : vector<1x8x256xf32>, i32 -> vector<1x8x256xf32>
    %c6 = arith.constant 6 : index
    %c0_22 = arith.constant 0 : index
    %83 = vector.load %arg1[%c6, %c0_22] : memref<16x256xf32, #tpu.memory_space<vmem>>, vector<1x256xf32>
    %84 = vector.shape_cast %83 : vector<1x256xf32> to vector<1x1x256xf32>
    %85 = vector.broadcast %84 : vector<1x1x256xf32> to vector<1x8x256xf32>
    %86 = arith.mulf %82, %85 : vector<1x8x256xf32>
    %87 = arith.addf %80, %86 : vector<1x8x256xf32>
    %88 = vector.extract_strided_slice %87 {offsets = [0, 0, 0], sizes = [1, 1, 256], strides = [1, 1, 1]} : vector<1x8x256xf32> to vector<1x1x256xf32>
    %c48_i32 = arith.constant 48 : i32
    %89 = tpu.dynamic_rotate %88 by %c48_i32 dim 2 : vector<1x1x256xf32>, i32 -> vector<1x1x256xf32>
    %c8 = arith.constant 8 : index
    %c0_23 = arith.constant 0 : index
    %90 = vector.load %arg1[%c8, %c0_23] : memref<16x256xf32, #tpu.memory_space<vmem>>, vector<1x256xf32>
    %91 = vector.shape_cast %90 : vector<1x256xf32> to vector<1x1x256xf32>
    %92 = arith.mulf %89, %91 : vector<1x1x256xf32>
    %93 = vector.extract_strided_slice %87 {offsets = [0, 1, 0], sizes = [1, 1, 256], strides = [1, 1, 1]} : vector<1x8x256xf32> to vector<1x1x256xf32>
    %c32_i32 = arith.constant 32 : i32
    %94 = tpu.dynamic_rotate %93 by %c32_i32 dim 2 : vector<1x1x256xf32>, i32 -> vector<1x1x256xf32>
    %c9 = arith.constant 9 : index
    %c0_24 = arith.constant 0 : index
    %95 = vector.load %arg1[%c9, %c0_24] : memref<16x256xf32, #tpu.memory_space<vmem>>, vector<1x256xf32>
    %96 = vector.shape_cast %95 : vector<1x256xf32> to vector<1x1x256xf32>
    %97 = arith.mulf %94, %96 : vector<1x1x256xf32>
    %98 = arith.addf %92, %97 : vector<1x1x256xf32>
    %99 = vector.extract_strided_slice %87 {offsets = [0, 2, 0], sizes = [1, 1, 256], strides = [1, 1, 1]} : vector<1x8x256xf32> to vector<1x1x256xf32>
    %c16_i32 = arith.constant 16 : i32
    %100 = tpu.dynamic_rotate %99 by %c16_i32 dim 2 : vector<1x1x256xf32>, i32 -> vector<1x1x256xf32>
    %c10 = arith.constant 10 : index
    %c0_25 = arith.constant 0 : index
    %101 = vector.load %arg1[%c10, %c0_25] : memref<16x256xf32, #tpu.memory_space<vmem>>, vector<1x256xf32>
    %102 = vector.shape_cast %101 : vector<1x256xf32> to vector<1x1x256xf32>
    %103 = arith.mulf %100, %102 : vector<1x1x256xf32>
    %104 = arith.addf %98, %103 : vector<1x1x256xf32>
    %105 = vector.extract_strided_slice %87 {offsets = [0, 3, 0], sizes = [1, 1, 256], strides = [1, 1, 1]} : vector<1x8x256xf32> to vector<1x1x256xf32>
    %c11 = arith.constant 11 : index
    %c0_26 = arith.constant 0 : index
    %106 = vector.load %arg1[%c11, %c0_26] : memref<16x256xf32, #tpu.memory_space<vmem>>, vector<1x256xf32>
    %107 = vector.shape_cast %106 : vector<1x256xf32> to vector<1x1x256xf32>
    %108 = arith.mulf %105, %107 : vector<1x1x256xf32>
    %109 = arith.addf %104, %108 : vector<1x1x256xf32>
    %110 = vector.extract_strided_slice %87 {offsets = [0, 4, 0], sizes = [1, 1, 256], strides = [1, 1, 1]} : vector<1x8x256xf32> to vector<1x1x256xf32>
    %c240_i32 = arith.constant 240 : i32
    %111 = tpu.dynamic_rotate %110 by %c240_i32 dim 2 : vector<1x1x256xf32>, i32 -> vector<1x1x256xf32>
    %c12 = arith.constant 12 : index
    %c0_27 = arith.constant 0 : index
    %112 = vector.load %arg1[%c12, %c0_27] : memref<16x256xf32, #tpu.memory_space<vmem>>, vector<1x256xf32>
    %113 = vector.shape_cast %112 : vector<1x256xf32> to vector<1x1x256xf32>
    %114 = arith.mulf %111, %113 : vector<1x1x256xf32>
    %115 = arith.addf %109, %114 : vector<1x1x256xf32>
    %116 = vector.extract_strided_slice %87 {offsets = [0, 5, 0], sizes = [1, 1, 256], strides = [1, 1, 1]} : vector<1x8x256xf32> to vector<1x1x256xf32>
    %c224_i32 = arith.constant 224 : i32
    %117 = tpu.dynamic_rotate %116 by %c224_i32 dim 2 : vector<1x1x256xf32>, i32 -> vector<1x1x256xf32>
    %c13 = arith.constant 13 : index
    %c0_28 = arith.constant 0 : index
    %118 = vector.load %arg1[%c13, %c0_28] : memref<16x256xf32, #tpu.memory_space<vmem>>, vector<1x256xf32>
    %119 = vector.shape_cast %118 : vector<1x256xf32> to vector<1x1x256xf32>
    %120 = arith.mulf %117, %119 : vector<1x1x256xf32>
    %121 = arith.addf %115, %120 : vector<1x1x256xf32>
    %122 = vector.extract_strided_slice %87 {offsets = [0, 6, 0], sizes = [1, 1, 256], strides = [1, 1, 1]} : vector<1x8x256xf32> to vector<1x1x256xf32>
    %c208_i32 = arith.constant 208 : i32
    %123 = tpu.dynamic_rotate %122 by %c208_i32 dim 2 : vector<1x1x256xf32>, i32 -> vector<1x1x256xf32>
    %c14 = arith.constant 14 : index
    %c0_29 = arith.constant 0 : index
    %124 = vector.load %arg1[%c14, %c0_29] : memref<16x256xf32, #tpu.memory_space<vmem>>, vector<1x256xf32>
    %125 = vector.shape_cast %124 : vector<1x256xf32> to vector<1x1x256xf32>
    %126 = arith.mulf %123, %125 : vector<1x1x256xf32>
    %127 = arith.addf %121, %126 : vector<1x1x256xf32>
    %128 = arith.negf %127 : vector<1x1x256xf32>
    %129 = math.exp %128 : vector<1x1x256xf32>
    %cst_30 = arith.constant 1.000000e+00 : f32
    %130 = vector.broadcast %cst_30 : f32 to vector<1x1x256xf32>
    %131 = arith.addf %130, %129 : vector<1x1x256xf32>
    %132 = arith.divf %130, %131 : vector<1x1x256xf32>
    %133 = vector.broadcast %132 : vector<1x1x256xf32> to vector<1x32x256xf32>
    %134 = arith.mulf %0, %133 : vector<1x32x256xf32>
    %c0_31 = arith.constant 0 : index
    %c0_32 = arith.constant 0 : index
    %c0_33 = arith.constant 0 : index
    %135 = vector.load %arg4[%c0_31, %c0_32, %c0_33] : memref<1x32x256xf32, #tpu.memory_space<vmem>>, vector<1x32x256xf32>
    tpu.vector_store %arg4[%c0_31, %c0_32, %c0_33], %134 {strides = array<i32>} : memref<1x32x256xf32, #tpu.memory_space<vmem>>, vector<1x32x256xf32>,
    return
  }
  func.func @transform_0(%arg0: i32) -> (i32, i32) {
    %c0_i32 = arith.constant 0 : i32
    %c0_i32_0 = arith.constant 0 : i32
    %c0_i32_1 = arith.constant 0 : i32
    return %c0_i32, %c0_i32_0 : i32, i32
  }
  func.func @transform_1(%arg0: i32) -> (i32, i32) {
    %c0_i32 = arith.constant 0 : i32
    %c0_i32_0 = arith.constant 0 : i32
    %c0_i32_1 = arith.constant 0 : i32
    return %c0_i32, %c0_i32_0 : i32, i32
  }
  func.func @transform_2(%arg0: i32) -> (i32, i32, i32) {
    %c0_i32 = arith.constant 0 : i32
    %c0_i32_0 = arith.constant 0 : i32
    %c0_i32_1 = arith.constant 0 : i32
    return %arg0, %c0_i32, %c0_i32_0 : i32, i32, i32
  }
  func.func @transform_3(%arg0: i32) -> (i32, i32, i32) {
    %c0_i32 = arith.constant 0 : i32
    %c0_i32_0 = arith.constant 0 : i32
    %c0_i32_1 = arith.constant 0 : i32
    return %arg0, %c0_i32, %c0_i32_0 : i32, i32, i32
  }
}

</mosaic_0001>

<llo_original>
// kernel: cbam_forward.1
$region0: #{cbam_forward.1}
  #allocation0 [shape = 'u32[]', space=smem, size = 0x4, offset = 0x4, fixed_abs, tag = 'smem constant byte address 0x4 - core index']
  #allocation1 [shape = 'u32[144,128]{1,0:T(1,128)}', space=vmem, size = 0x12000, scoped, tag = 'internal scratch']
  %s0 = inlined_call_operand.vmem [shape: f32[16,256], index: 0, kind: input, shape index: {}]
  %s1 = inlined_call_operand.vmem [shape: f32[128,128], index: 1, kind: input, shape index: {}]
  %s2 = inlined_call_operand.vmem [shape: f32[2,32,256], index: 2, kind: input, shape index: {}]
  %s3 = inlined_call_operand.vmem [shape: f32[2,32,256], index: 3, kind: output, shape index: {}]
  %s4 = sld [smem:[#allocation0]]
  $region45: #{cbam_forward.1} parent=0
    _
  %s6 = ssub.s32 1, %s4
  %s7 = scalar_select 0, %s6, %s4
  loop: start=0, step=1, limit=4
  $region2: #{cbam_forward.1} parent=0 // loop_pre_header
    _
  $region3: #{cbam_forward.1} parent=0 // loop_header
    %s9 = sphi 0, %s13
    %p10 = scmp.ge.s32.totalorder %s9, 4
    %s17 = sphi 0, %s17
    %s19 = sphi 0, %s17
    %s20 = sphi 0, %s19
    %s34 = sphi 0, %s20
    %s38 = sphi 0, %s38
    %s40 = sphi 0, %s38
    %s41 = sphi 0, %s40
    %s55 = sphi 0, %s41
    %s61 = sphi 0, %s63
    %s64 = sphi 0, %s61
    %s65 = sphi 0, %s64
    %s81 = sphi 0, %s65
    %s87 = sphi 0, %s89
    %s90 = sphi 0, %s87
    %s91 = sphi 0, %s90
    %s107 = sphi 0, %s91
  $region4: #{cbam_forward.1} parent=0 // loop_header_branch
    %12 = sbr.rel (%p10) target = $region8
  $region5: #{cbam_forward.1} parent=0 // loop_body
    %s14 = ssub.s32 %s9, 1
    %s15 = ssub.s32 %s9, 2
    %s16 = sadd.s32 %s9, 1
    %s18 = sadd.s32 %s17, 1
    %p21 = scmp.eq.s32.totalorder %s9, 1
    %p22 = scmp.ne.s32.totalorder %s17, %s19
    %p23 = scmp.eq.s32.totalorder %s9, 0
    %p24 = por %p22, %p23
    %p25 = scmp.ne.s32.totalorder %s17, %s19
    %p26 = scmp.eq.s32.totalorder %s14, 1
    %p27 = por %p25, %p26
    %p28 = scmp.ne.s32.totalorder %s19, %s20
    %p29 = scmp.eq.s32.totalorder %s14, 0
    %p30 = por %p28, %p29
    %p31 = scmp.ne.s32.totalorder %s19, %s20
    %p32 = scmp.eq.s32.totalorder %s15, 1
    %p33 = por %p31, %p32
    %p35 = scmp.ne.s32.totalorder %s20, %s34
    %p36 = scmp.eq.s32.totalorder %s15, 0
    %p37 = por %p35, %p36
    %s39 = sadd.s32 %s38, 1
    %p42 = scmp.eq.s32.totalorder %s9, 1
    %p43 = scmp.ne.s32.totalorder %s38, %s40
    %p44 = scmp.eq.s32.totalorder %s9, 0
    %p45 = por %p43, %p44
    %p46 = scmp.ne.s32.totalorder %s38, %s40
    %p47 = scmp.eq.s32.totalorder %s14, 1
    %p48 = por %p46, %p47
    %p49 = scmp.ne.s32.totalorder %s40, %s41
    %p50 = scmp.eq.s32.totalorder %s14, 0
    %p51 = por %p49, %p50
    %p52 = scmp.ne.s32.totalorder %s40, %s41
    %p53 = scmp.eq.s32.totalorder %s15, 1
    %p54 = por %p52, %p53
    %p56 = scmp.ne.s32.totalorder %s41, %s55
    %p57 = scmp.eq.s32.totalorder %s15, 0
    %p58 = por %p56, %p57
    %s59 = ssub.s32 %s9, %s16
    %p60 = scmp.eq.s32.totalorder %s59, 0
    %s62 = sadd.s32 %s61, 1
    %s63 = scalar_select %p60, %s61, %s62
    %p66 = pneg %p60
    %p67 = scmp.eq.s32.totalorder %s9, 1
    %p68 = por %p66, %p67
    %p69 = scmp.ne.s32.totalorder %s61, %s64
    %p70 = scmp.eq.s32.totalorder %s9, 0
    %p71 = por %p69, %p70
    %p72 = scmp.ne.s32.totalorder %s61, %s64
    %p73 = scmp.eq.s32.totalorder %s14, 1
    %p74 = por %p72, %p73
    %p75 = scmp.ne.s32.totalorder %s64, %s65
    %p76 = scmp.eq.s32.totalorder %s14, 0
    %p77 = por %p75, %p76
    %p78 = scmp.ne.s32.totalorder %s64, %s65
    %p79 = scmp.eq.s32.totalorder %s15, 1
    %p80 = por %p78, %p79
    %p82 = scmp.ne.s32.totalorder %s65, %s81
    %p83 = scmp.eq.s32.totalorder %s15, 0
    %p84 = por %p82, %p83
    %s85 = ssub.s32 %s9, %s16
    %p86 = scmp.eq.s32.totalorder %s85, 0
    %s88 = sadd.s32 %s87, 1
    %s89 = scalar_select %p86, %s87, %s88
    %p92 = pneg %p86
    %p93 = scmp.eq.s32.totalorder %s9, 1
    %p94 = por %p92, %p93
    %p95 = scmp.ne.s32.totalorder %s87, %s90
    %p96 = scmp.eq.s32.totalorder %s9, 0
    %p97 = por %p95, %p96
    %p98 = scmp.ne.s32.totalorder %s87, %s90
    %p99 = scmp.eq.s32.totalorder %s14, 1
    %p100 = por %p98, %p99
    %p101 = scmp.ne.s32.totalorder %s90, %s91
    %p102 = scmp.eq.s32.totalorder %s14, 0
    %p103 = por %p101, %p102
    %p104 = scmp.ne.s32.totalorder %s90, %s91
    %p105 = scmp.eq.s32.totalorder %s15, 1
    %p106 = por %p104, %p105
    %p108 = scmp.ne.s32.totalorder %s91, %s107
    %p109 = scmp.eq.s32.totalorder %s15, 0
    %p110 = por %p108, %p109
    %p111 = scmp.le.s32.totalorder 1, %s9
    %p112 = scmp.lt.s32.totalorder %s9, 3
    %p113 = pnand %p111, %p112
    %p114 = pneg %p113
    // Predicated region
    $region9: #{cbam_forward.1} parent=5 // pred_check
      _
    $region10: #{cbam_forward.1} parent=5 // pred_check_branch
      %116 = sbr.rel (%p113) target = $region12
    $region11: #{cbam_forward.1} parent=5 // pred_region
      %s117 = ssub.s32 %s9, 1
      // Predicated region
      $region13: #{cbam_forward.1} parent=11 // pred_check
        %p118 = pneg %p30
      $region14: #{cbam_forward.1} parent=11 // pred_check_branch
        %120 = sbr.rel (%p118) target = $region16
      $region15: #{cbam_forward.1} parent=11 // pred_region
        _
      $region16: #{cbam_forward.1} parent=11 // pred_fallthru
        _
      // Predicated region
      $region17: #{cbam_forward.1} parent=11 // pred_check
        %p121 = pneg %p51
      $region18: #{cbam_forward.1} parent=11 // pred_check_branch
        %123 = sbr.rel (%p121) target = $region20
      $region19: #{cbam_forward.1} parent=11 // pred_region
        _
      $region20: #{cbam_forward.1} parent=11 // pred_fallthru
        _
    $region12: #{cbam_forward.1} parent=5 // pred_fallthru
      _
    %p124 = scmp.lt.s32.totalorder %s9, 2
    // Predicated region
    $region21: #{cbam_forward.1} parent=5 // pred_check
      %p125 = pneg %p124
    $region22: #{cbam_forward.1} parent=5 // pred_check_branch
      %127 = sbr.rel (%p125) target = $region24
    $region23: #{cbam_forward.1} parent=5 // pred_region
      // Predicated region
      $region25: #{cbam_forward.1} parent=23 // pred_check
        %p128 = pneg %p71
      $region26: #{cbam_forward.1} parent=23 // pred_check_branch
        %130 = sbr.rel (%p128) target = $region28
      $region27: #{cbam_forward.1} parent=23 // pred_region
        %p131 = scmp.lt.s32.totalorder %s9, 1
        %s132 = scalar_select %p131, %s9, 1
        %s133 = smul.addr %s132, 8
        %s134 = smul.addr %s133, 8
        %s135 = scalar_lea.vmem %s2, %s134
      $region28: #{cbam_forward.1} parent=23 // pred_fallthru
        _
    $region24: #{cbam_forward.1} parent=5 // pred_fallthru
      _
    %p136 = scmp.le.s32.totalorder 1, %s9
    %p137 = scmp.lt.s32.totalorder %s9, 3
    %p138 = pnand %p136, %p137
    %p139 = pneg %p138
    // Predicated region
    $region29: #{cbam_forward.1} parent=5 // pred_check
      _
    $region30: #{cbam_forward.1} parent=5 // pred_check_branch
      %141 = sbr.rel (%p138) target = $region32
    $region31: #{cbam_forward.1} parent=5 // pred_region
      %s142 = ssub.s32 %s9, 1
      %p143 = pneg %p30
      %p144 = pneg %p27
      %p145 = pneg %p51
      %p146 = pneg %p48
      %p147 = scmp.lt.s32.totalorder %s14, 1
      %s148 = scalar_select %p147, %s14, 1
      %s149 = smul.addr %s148, 8
      %s150 = smul.addr %s149, 8
      %s151 = scalar_lea.vmem %s2, %s150
      %p152 = pneg %p77
      %p153 = pneg %p74
      %p154 = pneg %p103
      %p155 = pneg %p100
      %p156 = scmp.lt.s32.totalorder %s14, 1
      %s157 = scalar_select %p156, %s14, 1
      %s158 = smul.addr %s157, 8
      %s159 = smul.addr %s158, 8
      %s160 = scalar_lea.vmem %s3, %s159
      %p161 = scmp.lt.s32.totalorder %s14, 1
      %s162 = scalar_select %p161, %s14, 1
      %s163 = smul.addr %s162, 8
      %s164 = smul.addr %s163, 8
      %s165 = scalar_lea.vmem %s2, %s164
      %p166 = scmp.lt.s32.totalorder %s14, 1
      %s167 = scalar_select %p166, %s14, 1
      %s168 = smul.addr %s167, 8
      %s169 = smul.addr %s168, 8
      %s170 = scalar_lea.vmem %s3, %s169
      %v172 = vld [vmem:[%s165] sm:$0xff]
      %v173 = vld [vmem:[%s165 + $0x8] sm:$0xff]
      %v174 = vld [vmem:[%s165 + $0x10] sm:$0xff]
      %v175 = vld [vmem:[%s165 + $0x18] sm:$0xff]
      %v176 = vld [vmem:[%s165 + $0x20] sm:$0xff]
      %v177 = vld [vmem:[%s165 + $0x28] sm:$0xff]
      %v178 = vld [vmem:[%s165 + $0x30] sm:$0xff]
      %v179 = vld [vmem:[%s165 + $0x38] sm:$0xff]
      %v180 = vadd.f32 %v172, %v173
      %181 = vadd.xlane.f32.xlu0 %v180
      %v182 = vpop.xlane.xlu0 %181
      %v183 = vadd.f32 %v174, %v175
      %184 = vadd.xlane.f32.xlu0 %v183
      %v185 = vpop.xlane.xlu0 %184
      %v186 = vadd.f32 %v176, %v177
      %187 = vadd.xlane.f32.xlu0 %v186
      %v188 = vpop.xlane.xlu0 %187
      %v189 = vadd.f32 %v178, %v179
      %190 = vadd.xlane.f32.xlu0 %v189
      %v191 = vpop.xlane.xlu0 %190
      %v192 = vrcp.pop 256.0
      %v193 = vmul.f32 %v182, %v192
      %v194 = vmul.f32 %v185, %v192
      %v195 = vmul.f32 %v188, %v192
      %v196 = vmul.f32 %v191, %v192
      %v197 = vmax.f32 %v172, %v173
      %198 = vmax.xlane.f32.xlu0 %v197
      %v199 = vpop.xlane.xlu0 %198
      %v200 = vmax.f32 %v174, %v175
      %201 = vmax.xlane.f32.xlu0 %v200
      %v202 = vpop.xlane.xlu0 %201
      %v203 = vmax.f32 %v176, %v177
      %204 = vmax.xlane.f32.xlu0 %v203
      %v205 = vpop.xlane.xlu0 %204
      %v206 = vmax.f32 %v178, %v179
      %207 = vmax.xlane.f32.xlu0 %v206
      %v208 = vpop.xlane.xlu0 %207
      %v209 = vld [vmem:[%s1] sm:$0xff]
      %v210 = vld [vmem:[%s1 + $0x8] sm:$0xff]
      %v211 = vld [vmem:[%s1 + $0x10] sm:$0xff]
      %v212 = vld [vmem:[%s1 + $0x18] sm:$0xff]
      %v213 = vld [vmem:[%s1 + $0x20] sm:$0xff]
      %v214 = vld [vmem:[%s1 + $0x28] sm:$0xff]
      %v215 = vld [vmem:[%s1 + $0x30] sm:$0xff]
      %v216 = vld [vmem:[%s1 + $0x38] sm:$0xff]
      %v217 = vmul.f32 %v193, %v209
      %v218 = vmul.f32 %v194, %v210
      %v219 = vmul.f32 %v195, %v211
      %v220 = vmul.f32 %v196, %v212
      %vm221 = vcmask 15360
      %v222 = vsel %vm221, %v217, 0.0
      %v223 = vsel %vm221, %v218, 0.0
      %v224 = vadd.f32 %v222, %v223
      %v225 = vsel %vm221, %v219, 0.0
      %v226 = vadd.f32 %v224, %v225
      %v227 = vsel %vm221, %v220, 0.0
      %v228 = vadd.f32 %v226, %v227
      %v229 = vrot.slane %v228, 4
      %v230 = vadd.f32 %v228, %v229
      %v231 = vrot.slane %v230, 2
      %v232 = vadd.f32 %v230, %v231
      %v233 = vrot.slane %v232, 1
      %v234 = vadd.f32 %v232, %v233
      %v235 = vmul.f32 %v199, %v213
      %v236 = vmul.f32 %v202, %v214
      %v237 = vmul.f32 %v205, %v215
      %v238 = vmul.f32 %v208, %v216
      %v239 = vsel %vm221, %v235, 0.0
      %v240 = vsel %vm221, %v236, 0.0
      %v241 = vadd.f32 %v239, %v240
      %v242 = vsel %vm221, %v237, 0.0
      %v243 = vadd.f32 %v241, %v242
      %v244 = vsel %vm221, %v238, 0.0
      %v245 = vadd.f32 %v243, %v244
      %v246 = vrot.slane %v245, 4
      %v247 = vadd.f32 %v245, %v246
      %v248 = vrot.slane %v247, 2
      %v249 = vadd.f32 %v247, %v248
      %v250 = vrot.slane %v249, 1
      %v251 = vadd.f32 %v249, %v250
      %v252 = vadd.f32 %v234, %v251
      %v253 = vmax.f32 %v252, 0.0
      %v254 = vld [vmem:[%s1 + $0x40] sm:$0x3]
      %256 = vbcast.lane.b32.xlu0 %v253, 256
      %v257 = vpop.permute.xlu0 %256
      %v258 = vmul.f32 %v257, %v254
      %vm259 = vcmask 254976
      %v260 = vsel %vm259, %v258, 0.0
      %v261 = vrot.slane %v260, 4
      %v262 = vadd.f32 %v260, %v261
      %v263 = vrot.slane %v262, 2
      %v264 = vadd.f32 %v262, %v263
      %v265 = vrot.slane %v264, 1
      %v266 = vadd.f32 %v264, %v265
      %v267 = vxor.u32 %v266, 2147483648
      %v268 = vmul.f32 %v267, 1.442695
      %v269 = vpow.pop %v268
      %v270 = vadd.f32 %v269, 1.0
      %v271 = vrcp.pop %v270
      %v272 = vmul.f32 1.0, %v271
      %274 = vbcast.lane.b32.xlu0 %v272, 256
      %v275 = vpop.permute.xlu0 %274
      %s277 = sor.u32 256, 8
      %278 = vbcast.lane.b32.xlu0 %v272, %s277
      %v279 = vpop.permute.xlu0 %278
      %s281 = sor.u32 256, 16
      %282 = vbcast.lane.b32.xlu0 %v272, %s281
      %v283 = vpop.permute.xlu0 %282
      %s285 = sor.u32 256, 24
      %286 = vbcast.lane.b32.xlu0 %v272, %s285
      %v287 = vpop.permute.xlu0 %286
      %v288 = vmul.f32 %v172, %v275
      %v289 = vmul.f32 %v173, %v275
      %v290 = vmul.f32 %v174, %v279
      %v291 = vmul.f32 %v175, %v279
      %v292 = vmul.f32 %v176, %v283
      %v293 = vmul.f32 %v177, %v283
      %v294 = vmul.f32 %v178, %v287
      %v295 = vmul.f32 %v179, %v287
      %v296 = vpack.c.bf16 %v290, %v288
      %v297 = vpack.c.bf16 %v291, %v289
      %v298 = vpack.c.bf16 %v294, %v292
      %v299 = vpack.c.bf16 %v295, %v293
      %v300 = vpack.c.bf16 %v174, %v172
      %v301 = vpack.c.bf16 %v175, %v173
      %v302 = vpack.c.bf16 %v178, %v176
      %v303 = vpack.c.bf16 %v179, %v177
      %v304 = vld [vmem:[%s1 + $0x48] sm:$0xff]
      %v305 = vld [vmem:[%s1 + $0x50] sm:$0xff]
      %v306 = vld [vmem:[%s1 + $0x58] sm:$0xff]
      %v307 = vld [vmem:[%s1 + $0x60] sm:$0xff]
      %v308 = vld [vmem:[%s1 + $0x68] sm:$0xff]
      %v309 = vld [vmem:[%s1 + $0x70] sm:$0xff]
      %v310 = vld [vmem:[%s1 + $0x78] sm:$0xff]
      %v311 = vpack.c.bf16 %v305, %v304
      %v312 = vpack.c.bf16 %v307, %v306
      %v313 = vpack.c.bf16 %v309, %v308
      %v314 = vpack.c.bf16 %v310, %v310
      %vm315 = vcmask 523264
      %v317 = vsel %vm315, %v311, 0
      %v320 = vsel %vm315, %v312, 0
      %v323 = vsel %vm315, %v313, 0
      %v326 = vsel %vm315, %v314, 0
      %328 = vmatprep.subr.bf16.mxu0 %v297
      %329 = vmatpush1.bf16.msra.mxu0 %v296
      %330 = vmatprep.subr.bf16.mxu0 %v299
      %331 = vmatpush1.bf16.msra.mxu0 %v298
      %332 = vmatprep.subr.bf16.mxu0 %v301
      %333 = vmatpush1.bf16.msra.mxu0 %v300
      %334 = vmatprep.subr.bf16.mxu0 %v303
      %335 = vmatpush1.bf16.msra.mxu0 %v302
      %336 = vmatprep.subr.bf16.mxu0 0
      %337 = vmatpush1.bf16.msra.mxu0 0
      %338 = vmatprep.subr.bf16.mxu0 0
      %339 = vmatpush1.bf16.msra.mxu0 0
      %340 = vmatprep.subr.bf16.mxu0 0
      %341 = vmatpush1.bf16.msra.mxu0 0
      %342 = vmatprep.subr.bf16.mxu0 0
      %343 = vmatpush1.bf16.msra.mxu0 0
      %344 = vmatprep.subr.bf16.mxu0 0
      %345 = vmatpush1.bf16.msra.mxu0 0
      %346 = vmatprep.subr.bf16.mxu0 0
      %347 = vmatpush1.bf16.msra.mxu0 0
      %348 = vmatprep.subr.bf16.mxu0 0
      %349 = vmatpush1.bf16.msra.mxu0 0
      %350 = vmatprep.subr.bf16.mxu0 0
      %351 = vmatpush1.bf16.msra.mxu0 0
      %352 = vmatprep.subr.bf16.mxu0 0
      %353 = vmatpush1.bf16.msra.mxu0 0
      %354 = vmatprep.subr.bf16.mxu0 0
      %355 = vmatpush1.bf16.msra.mxu0 0
      %356 = vmatprep.subr.bf16.mxu0 0
      %357 = vmatpush1.bf16.msra.mxu0 0
      %358 = vmatprep.subr.bf16.mxu0 0
      %359 = vmatpush1.bf16.msra.mxu0 0
      %360 = vmatprep.mubr.bf16.mxu0 0
      %361 = vmatmul.mubr.bf16.gmra.mrb[0].mxu0 %v317
      %v362 = vpop.f32.mrb[0].mxu0
      %v363 = vadd.f32 0.0, %v362
      %v364 = vpop.f32.mrb[0].mxu0
      %v365 = vadd.f32 0.0, %v364
      %v366 = vpop.f32.mrb[0].mxu0
      %v367 = vadd.f32 0.0, %v366
      %v368 = vpop.f32.mrb[0].mxu0
      %v369 = vadd.f32 0.0, %v368
      %370 = vmatprep.mubr.bf16.mxu0 0
      %371 = vmatmul.mubr.bf16.gmra.mrb[0].mxu0 %v320
      %v372 = vpop.f32.mrb[0].mxu0
      %v373 = vadd.f32 0.0, %v372
      %v374 = vpop.f32.mrb[0].mxu0
      %v375 = vadd.f32 0.0, %v374
      %v376 = vpop.f32.mrb[0].mxu0
      %v377 = vadd.f32 0.0, %v376
      %v378 = vpop.f32.mrb[0].mxu0
      %v379 = vadd.f32 0.0, %v378
      %380 = vmatprep.mubr.bf16.mxu0 0
      %381 = vmatmul.mubr.bf16.gmra.mrb[0].mxu0 %v323
      %v382 = vpop.f32.mrb[0].mxu0
      %v383 = vadd.f32 0.0, %v382
      %v384 = vpop.f32.mrb[0].mxu0
      %v385 = vadd.f32 0.0, %v384
      %v386 = vpop.f32.mrb[0].mxu0
      %v387 = vadd.f32 0.0, %v386
      %v388 = vpop.f32.mrb[0].mxu0
      %v389 = vadd.f32 0.0, %v388
      %390 = vmatprep.mubr.bf16.mxu0 0
      %391 = vmatmul.mubr.bf16.gmra.mrb[0].mxu0 %v326
      %v392 = vpop.f32.mrb[0].mxu0
      %v393 = vadd.f32 0.0, %v392
      %v394 = vpop.f32.mrb[0].mxu0
      %v395 = vadd.f32 0.0, %v394
      %v396 = vpop.f32.mrb[0].mxu0
      %v397 = vpop.f32.mrb[0].mxu0
      %398 = vdwg.mxu0
      %399 = vrot.lane.b32.xlu0 %v363, 3
      %v400 = vpop.permute.xlu0 %399
      %401 = vrot.lane.b32.xlu0 %v365, 3
      %v402 = vpop.permute.xlu0 %401
      %v403 = vlaneseq
      %v404 = vand.u32 %v403, 127
      %vm405 = vcmp.lt.s32.totalorder %v404, 3
      %v406 = vsel %vm405, %v400, %v402
      %v407 = vsel %vm405, %v402, %v400
      %v408 = vld [vmem:[%s0] ss:$8 sm:$0x3]
      %v410 = vlaneseq
      %v411 = vshrl.u32 %v410, 7
      %v412 = vsub.s32 0, %v411
      %v413 = vrot.slane %v408, %v412
      %v414 = vlaneseq
      %v415 = vshrl.u32 %v414, 7
      %v416 = vsub.s32 1, %v415
      %v417 = vrot.slane %v408, %v416
      %v420 = vmul.f32 %v407, %v413
      %v421 = vmul.f32 %v406, %v417
      %422 = vrot.lane.b32.xlu0 %v367, 2
      %v423 = vpop.permute.xlu0 %422
      %424 = vrot.lane.b32.xlu0 %v369, 2
      %v425 = vpop.permute.xlu0 %424
      %vm426 = vcmp.lt.s32.totalorder %v404, 2
      %v427 = vsel %vm426, %v423, %v425
      %v428 = vsel %vm426, %v425, %v423
      %s429 = scalar_lea.vmem %s0, 1
      %v430 = vld [vmem:[%s429] ss:$8 sm:$0x3]
      %v432 = vlaneseq
      %v433 = vshrl.u32 %v432, 7
      %v434 = vsub.s32 0, %v433
      %v435 = vrot.slane %v430, %v434
      %v436 = vlaneseq
      %v437 = vshrl.u32 %v436, 7
      %v438 = vsub.s32 1, %v437
      %v439 = vrot.slane %v430, %v438
      %v442 = vmul.f32 %v428, %v435
      %v443 = vmul.f32 %v427, %v439
      %v444 = vadd.f32 %v420, %v442
      %v445 = vadd.f32 %v421, %v443
      %446 = vrot.lane.b32.xlu0 %v373, 1
      %v447 = vpop.permute.xlu0 %446
      %448 = vrot.lane.b32.xlu0 %v375, 1
      %v449 = vpop.permute.xlu0 %448
      %vm450 = vcmp.lt.s32.totalorder %v404, 1
      %v451 = vsel %vm450, %v447, %v449
      %v452 = vsel %vm450, %v449, %v447
      %s453 = scalar_lea.vmem %s0, 2
      %v454 = vld [vmem:[%s453] ss:$8 sm:$0x3]
      %v456 = vlaneseq
      %v457 = vshrl.u32 %v456, 7
      %v458 = vsub.s32 0, %v457
      %v459 = vrot.slane %v454, %v458
      %v460 = vlaneseq
      %v461 = vshrl.u32 %v460, 7
      %v462 = vsub.s32 1, %v461
      %v463 = vrot.slane %v454, %v462
      %v466 = vmul.f32 %v452, %v459
      %v467 = vmul.f32 %v451, %v463
      %v468 = vadd.f32 %v444, %v466
      %v469 = vadd.f32 %v445, %v467
      %s470 = scalar_lea.vmem %s0, 3
      %v471 = vld [vmem:[%s470] ss:$8 sm:$0x3]
      %v473 = vlaneseq
      %v474 = vshrl.u32 %v473, 7
      %v475 = vsub.s32 0, %v474
      %v476 = vrot.slane %v471, %v475
      %v477 = vlaneseq
      %v478 = vshrl.u32 %v477, 7
      %v479 = vsub.s32 1, %v478
      %v480 = vrot.slane %v471, %v479
      %v483 = vmul.f32 %v377, %v476
      %v484 = vmul.f32 %v379, %v480
      %v485 = vadd.f32 %v468, %v483
      %v486 = vadd.f32 %v469, %v484
      %487 = vrot.lane.b32.xlu0 %v383, 127
      %v488 = vpop.permute.xlu0 %487
      %489 = vrot.lane.b32.xlu0 %v385, 127
      %v490 = vpop.permute.xlu0 %489
      %vm491 = vcmp.lt.s32.totalorder %v404, 127
      %v492 = vsel %vm491, %v488, %v490
      %v493 = vsel %vm491, %v490, %v488
      %s494 = scalar_lea.vmem %s0, 4
      %v495 = vld [vmem:[%s494] ss:$8 sm:$0x3]
      %v497 = vlaneseq
      %v498 = vshrl.u32 %v497, 7
      %v499 = vsub.s32 0, %v498
      %v500 = vrot.slane %v495, %v499
      %v501 = vlaneseq
      %v502 = vshrl.u32 %v501, 7
      %v503 = vsub.s32 1, %v502
      %v504 = vrot.slane %v495, %v503
      %v507 = vmul.f32 %v492, %v500
      %v508 = vmul.f32 %v493, %v504
      %v509 = vadd.f32 %v485, %v507
      %v510 = vadd.f32 %v486, %v508
      %511 = vrot.lane.b32.xlu0 %v387, 126
      %v512 = vpop.permute.xlu0 %511
      %513 = vrot.lane.b32.xlu0 %v389, 126
      %v514 = vpop.permute.xlu0 %513
      %vm515 = vcmp.lt.s32.totalorder %v404, 126
      %v516 = vsel %vm515, %v512, %v514
      %v517 = vsel %vm515, %v514, %v512
      %s518 = scalar_lea.vmem %s0, 5
      %v519 = vld [vmem:[%s518] ss:$8 sm:$0x3]
      %v521 = vlaneseq
      %v522 = vshrl.u32 %v521, 7
      %v523 = vsub.s32 0, %v522
      %v524 = vrot.slane %v519, %v523
      %v525 = vlaneseq
      %v526 = vshrl.u32 %v525, 7
      %v527 = vsub.s32 1, %v526
      %v528 = vrot.slane %v519, %v527
      %v531 = vmul.f32 %v516, %v524
      %v532 = vmul.f32 %v517, %v528
      %v533 = vadd.f32 %v509, %v531
      %v534 = vadd.f32 %v510, %v532
      %535 = vrot.lane.b32.xlu0 %v393, 125
      %v536 = vpop.permute.xlu0 %535
      %537 = vrot.lane.b32.xlu0 %v395, 125
      %v538 = vpop.permute.xlu0 %537
      %vm539 = vcmp.lt.s32.totalorder %v404, 125
      %v540 = vsel %vm539, %v536, %v538
      %v541 = vsel %vm539, %v538, %v536
      %s542 = scalar_lea.vmem %s0, 6
      %v543 = vld [vmem:[%s542] ss:$8 sm:$0x3]
      %v545 = vlaneseq
      %v546 = vshrl.u32 %v545, 7
      %v547 = vsub.s32 0, %v546
      %v548 = vrot.slane %v543, %v547
      %v549 = vlaneseq
      %v550 = vshrl.u32 %v549, 7
      %v551 = vsub.s32 1, %v550
      %v552 = vrot.slane %v543, %v551
      %v555 = vmul.f32 %v540, %v548
      %v556 = vmul.f32 %v541, %v552
      %v557 = vadd.f32 %v533, %v555
      %v558 = vadd.f32 %v534, %v556
      %559 = vrot.lane.b32.xlu0 %v557, 48
      %v560 = vpop.permute.xlu0 %559
      %561 = vrot.lane.b32.xlu0 %v558, 48
      %v562 = vpop.permute.xlu0 %561
      %vm563 = vcmp.lt.s32.totalorder %v404, 48
      %v564 = vsel %vm563, %v560, %v562
      %v565 = vsel %vm563, %v562, %v560
      %s566 = scalar_lea.vmem %s0, 16
      %v567 = vld [vmem:[%s566] ss:$8 sm:$0x3]
      %v569 = vlaneseq
      %v570 = vshrl.u32 %v569, 7
      %v571 = vsub.s32 0, %v570
      %v572 = vrot.slane %v567, %v571
      %v573 = vlaneseq
      %v574 = vshrl.u32 %v573, 7
      %v575 = vsub.s32 1, %v574
      %v576 = vrot.slane %v567, %v575
      %v579 = vmul.f32 %v565, %v572
      %v580 = vmul.f32 %v564, %v576
      %v583 = vrot.slane %v557, 1
      %v584 = vrot.slane %v558, 1
      %587 = vrot.lane.b32.xlu0 %v583, 32
      %v588 = vpop.permute.xlu0 %587
      %589 = vrot.lane.b32.xlu0 %v584, 32
      %v590 = vpop.permute.xlu0 %589
      %vm591 = vcmp.lt.s32.totalorder %v404, 32
      %v592 = vsel %vm591, %v588, %v590
      %v593 = vsel %vm591, %v590, %v588
      %s594 = scalar_lea.vmem %s0, 17
      %v595 = vld [vmem:[%s594] ss:$8 sm:$0x3]
      %v597 = vlaneseq
      %v598 = vshrl.u32 %v597, 7
      %v599 = vsub.s32 0, %v598
      %v600 = vrot.slane %v595, %v599
      %v601 = vlaneseq
      %v602 = vshrl.u32 %v601, 7
      %v603 = vsub.s32 1, %v602
      %v604 = vrot.slane %v595, %v603
      %v607 = vmul.f32 %v593, %v600
      %v608 = vmul.f32 %v592, %v604
      %v609 = vadd.f32 %v579, %v607
      %v610 = vadd.f32 %v580, %v608
      %v611 = vrot.slane %v557, 2
      %v612 = vrot.slane %v558, 2
      %615 = vrot.lane.b32.xlu0 %v611, 16
      %v616 = vpop.permute.xlu0 %615
      %617 = vrot.lane.b32.xlu0 %v612, 16
      %v618 = vpop.permute.xlu0 %617
      %vm619 = vcmp.lt.s32.totalorder %v404, 16
      %v620 = vsel %vm619, %v616, %v618
      %v621 = vsel %vm619, %v618, %v616
      %s622 = scalar_lea.vmem %s0, 18
      %v623 = vld [vmem:[%s622] ss:$8 sm:$0x3]
      %v625 = vlaneseq
      %v626 = vshrl.u32 %v625, 7
      %v627 = vsub.s32 0, %v626
      %v628 = vrot.slane %v623, %v627
      %v629 = vlaneseq
      %v630 = vshrl.u32 %v629, 7
      %v631 = vsub.s32 1, %v630
      %v632 = vrot.slane %v623, %v631
      %v635 = vmul.f32 %v621, %v628
      %v636 = vmul.f32 %v620, %v632
      %v637 = vadd.f32 %v609, %v635
      %v638 = vadd.f32 %v610, %v636
      %s639 = scalar_lea.vmem %s0, 19
      %v640 = vld [vmem:[%s639] ss:$8 sm:$0x3]
      %v642 = vlaneseq
      %v643 = vshrl.u32 %v642, 7
      %v644 = vsub.s32 0, %v643
      %v645 = vrot.slane %v640, %v644
      %v646 = vlaneseq
      %v647 = vshrl.u32 %v646, 7
      %v648 = vsub.s32 1, %v647
      %v649 = vrot.slane %v640, %v648
      %v652 = vmul.f32 %v557, %v645
      %v653 = vmul.f32 %v558, %v649
      %v656 = vrot.slane %v652, 3
      %v657 = vrot.slane %v653, 3
      %v660 = vadd.f32 %v637, %v656
      %v661 = vadd.f32 %v638, %v657
      %v662 = vrot.slane %v557, 4
      %v663 = vrot.slane %v558, 4
      %666 = vrot.lane.b32.xlu0 %v662, 112
      %v667 = vpop.permute.xlu0 %666
      %668 = vrot.lane.b32.xlu0 %v663, 112
      %v669 = vpop.permute.xlu0 %668
      %vm670 = vcmp.lt.s32.totalorder %v404, 112
      %v671 = vsel %vm670, %v667, %v669
      %v672 = vsel %vm670, %v669, %v667
      %s673 = scalar_lea.vmem %s0, 20
      %v674 = vld [vmem:[%s673] ss:$8 sm:$0x3]
      %v676 = vlaneseq
      %v677 = vshrl.u32 %v676, 7
      %v678 = vsub.s32 0, %v677
      %v679 = vrot.slane %v674, %v678
      %v680 = vlaneseq
      %v681 = vshrl.u32 %v680, 7
      %v682 = vsub.s32 1, %v681
      %v683 = vrot.slane %v674, %v682
      %v686 = vmul.f32 %v671, %v679
      %v687 = vmul.f32 %v672, %v683
      %v688 = vadd.f32 %v660, %v686
      %v689 = vadd.f32 %v661, %v687
      %v690 = vrot.slane %v557, 5
      %v691 = vrot.slane %v558, 5
      %694 = vrot.lane.b32.xlu0 %v690, 96
      %v695 = vpop.permute.xlu0 %694
      %696 = vrot.lane.b32.xlu0 %v691, 96
      %v697 = vpop.permute.xlu0 %696
      %vm698 = vcmp.lt.s32.totalorder %v404, 96
      %v699 = vsel %vm698, %v695, %v697
      %v700 = vsel %vm698, %v697, %v695
      %s701 = scalar_lea.vmem %s0, 21
      %v702 = vld [vmem:[%s701] ss:$8 sm:$0x3]
      %v704 = vlaneseq
      %v705 = vshrl.u32 %v704, 7
      %v706 = vsub.s32 0, %v705
      %v707 = vrot.slane %v702, %v706
      %v708 = vlaneseq
      %v709 = vshrl.u32 %v708, 7
      %v710 = vsub.s32 1, %v709
      %v711 = vrot.slane %v702, %v710
      %v714 = vmul.f32 %v699, %v707
      %v715 = vmul.f32 %v700, %v711
      %v716 = vadd.f32 %v688, %v714
      %v717 = vadd.f32 %v689, %v715
      %v718 = vrot.slane %v557, 6
      %v719 = vrot.slane %v558, 6
      %722 = vrot.lane.b32.xlu0 %v718, 80
      %v723 = vpop.permute.xlu0 %722
      %724 = vrot.lane.b32.xlu0 %v719, 80
      %v725 = vpop.permute.xlu0 %724
      %vm726 = vcmp.lt.s32.totalorder %v404, 80
      %v727 = vsel %vm726, %v723, %v725
      %v728 = vsel %vm726, %v725, %v723
      %s729 = scalar_lea.vmem %s0, 22
      %v730 = vld [vmem:[%s729] ss:$8 sm:$0x3]
      %v732 = vlaneseq
      %v733 = vshrl.u32 %v732, 7
      %v734 = vsub.s32 0, %v733
      %v735 = vrot.slane %v730, %v734
      %v736 = vlaneseq
      %v737 = vshrl.u32 %v736, 7
      %v738 = vsub.s32 1, %v737
      %v739 = vrot.slane %v730, %v738
      %v742 = vmul.f32 %v727, %v735
      %v743 = vmul.f32 %v728, %v739
      %v744 = vadd.f32 %v716, %v742
      %v745 = vadd.f32 %v717, %v743
      %v746 = vxor.u32 %v744, 2147483648
      %v747 = vxor.u32 %v745, 2147483648
      %v748 = vmul.f32 %v746, 1.442695
      %v749 = vpow.pop %v748
      %v750 = vmul.f32 %v747, 1.442695
      %v751 = vpow.pop %v750
      %v752 = vadd.f32 %v749, 1.0
      %v753 = vadd.f32 %v751, 1.0
      %v754 = vrcp.pop %v752
      %v755 = vmul.f32 1.0, %v754
      %v756 = vrcp.pop %v753
      %v757 = vmul.f32 1.0, %v756
      %v758 = vlaneseq
      %v759 = vshrl.u32 %v758, 7
      %v760 = vsub.s32 0, %v759
      %v761 = vrot.slane %v755, %v760
      %v762 = vlaneseq
      %v763 = vshrl.u32 %v762, 7
      %v764 = vsub.s32 0, %v763
      %v765 = vrot.slane %v757, %v764
      %v766 = vmul.f32 %v172, %v761
      %v767 = vmul.f32 %v173, %v765
      %v768 = vmul.f32 %v174, %v761
      %v769 = vmul.f32 %v175, %v765
      %v770 = vmul.f32 %v176, %v761
      %v771 = vmul.f32 %v177, %v765
      %v772 = vmul.f32 %v178, %v761
      %v773 = vmul.f32 %v179, %v765
      %774 = vst [vmem:[%s170] sm:$0xff] %v766
      %775 = vst [vmem:[%s170 + $0x8] sm:$0xff] %v767
      %776 = vst [vmem:[%s170 + $0x10] sm:$0xff] %v768
      %777 = vst [vmem:[%s170 + $0x18] sm:$0xff] %v769
      %778 = vst [vmem:[%s170 + $0x20] sm:$0xff] %v770
      %779 = vst [vmem:[%s170 + $0x28] sm:$0xff] %v771
      %780 = vst [vmem:[%s170 + $0x30] sm:$0xff] %v772
      %781 = vst [vmem:[%s170 + $0x38] sm:$0xff] %v773
      %p782 = scmp.lt.s32.totalorder %s14, 1
      %s783 = scalar_select %p782, %s14, 1
      %s784 = smul.addr %s783, 8
      %s785 = smul.addr %s784, 8
      %s786 = scalar_lea.vmem %s3, %s785
      // Predicated region
      $region33: #{cbam_forward.1} parent=31 // pred_check
        %p787 = pneg %p100
      $region34: #{cbam_forward.1} parent=31 // pred_check_branch
        %789 = sbr.rel (%p787) target = $region36
      $region35: #{cbam_forward.1} parent=31 // pred_region
        _
      $region36: #{cbam_forward.1} parent=31 // pred_fallthru
        _
    $region32: #{cbam_forward.1} parent=5 // pred_fallthru
      _
    %p790 = scmp.le.s32.totalorder 2, %s9
    // Predicated region
    $region37: #{cbam_forward.1} parent=5 // pred_check
      %p791 = pneg %p790
    $region38: #{cbam_forward.1} parent=5 // pred_check_branch
      %793 = sbr.rel (%p791) target = $region40
    $region39: #{cbam_forward.1} parent=5 // pred_region
      %s794 = ssub.s32 %s9, 2
      // Predicated region
      $region41: #{cbam_forward.1} parent=39 // pred_check
        %p795 = pneg %p106
      $region42: #{cbam_forward.1} parent=39 // pred_check_branch
        %797 = sbr.rel (%p795) target = $region44
      $region43: #{cbam_forward.1} parent=39 // pred_region
        %p798 = scmp.lt.s32.totalorder %s15, 1
        %s799 = scalar_select %p798, %s15, 1
        %s800 = smul.addr %s799, 8
        %s801 = smul.addr %s800, 8
        %s802 = scalar_lea.vmem %s3, %s801
      $region44: #{cbam_forward.1} parent=39 // pred_fallthru
        _
    $region40: #{cbam_forward.1} parent=5 // pred_fallthru
      _
  $region6: #{cbam_forward.1} parent=0 // loop_footer
    %s13 = sadd.s32 1, %s9
  $region7: #{cbam_forward.1} parent=0 // loop_footer_branch
    %8 = sbr.rel target = $region3
  $region8: #{cbam_forward.1} parent=0 // loop_exit
    _

</llo_original>
